<compile_context>
chip_gen: v7x
topology: tpu7x:2x2x1
jax: 0.10.0
libtpu: 0.0.40
codegen_flags: <defaults>
</compile_context>

<pallas_src>
import jax
import jax.numpy as jnp
from jax.experimental import pallas as pl
from jax.experimental.pallas import tpu as pltpu

LATENT = 64
IN_FEATURES = 201 * 6          # 1206
TB_MAX = 2048                  # batch-tile rows
VMEM_LIMIT_BYTES = 28 * 1024 * 1024


def _round_up(n, m):
    return ((n + m - 1) // m) * m


def _proprio_kernel(x_ref, w1_ref, w2_ref, b2_ref, w3_ref, b3_ref,
                    w4_ref, b4_ref, o_ref):
    # Cast the HBM-bound f32 input tile to bf16 at the MXU feed (in-kernel, so
    # the wrapper never re-materializes x in HBM).
    x = x_ref[...].astype(jnp.bfloat16)

    # inertial_encoder: Linear(1206 -> 128, no bias) + ReLU  (bf16 MXU, f32 acc)
    h = jnp.dot(x, w1_ref[...], preferred_element_type=jnp.float32)
    h = jnp.maximum(h, 0.0)
    # TODO(synk): training-mode Dropout(p=0.05) (pltpu.prng_* Bernoulli mask) not implemented.

    # Linear(128 -> 32) + ReLU
    h = jnp.dot(h.astype(jnp.bfloat16), w2_ref[...],
                preferred_element_type=jnp.float32) + b2_ref[...]
    h = jnp.maximum(h, 0.0)

    # fc: Linear(32 -> 64) + ReLU, then Linear(64 -> 64)
    h = jnp.dot(h.astype(jnp.bfloat16), w3_ref[...],
                preferred_element_type=jnp.float32) + b3_ref[...]
    h = jnp.maximum(h, 0.0)
    h = jnp.dot(h.astype(jnp.bfloat16), w4_ref[...],
                preferred_element_type=jnp.float32) + b4_ref[...]

    # F.normalize(dim=-1): x / max(||x||, 1e-12) == x * rsqrt(max(||x||^2, 1e-24))
    sq = jnp.sum(h * h, axis=-1, keepdims=True)
    o_ref[...] = h * jax.lax.rsqrt(jnp.maximum(sq, 1e-24))


def proprioception_forward(inertial, params, *, tb=TB_MAX):
    """inertial: (B, 201, 6) float32 -> (B, LATENT) float32, rows L2-normalized."""
    w1, w2, b2, w3, b3, w4, b4 = params
    B = inertial.shape[0]

    # Flatten (B, 201, 6) -> (B, 1206). Pure metadata reshape: no cast, no pad,
    # no extra HBM pass over the dominant operand.
    x = inertial.reshape(B, IN_FEATURES)

    # Batch tiling: 8-row aligned tile, cdiv grid (no batch-pad materialization;
    # out-of-bounds rows of the last block are masked on write).
    tb = min(tb, _round_up(B, 8))
    grid = (pl.cdiv(B, tb),)

    weights = (w1, w2, b2, w3, b3, w4, b4)

    def resident(a):  # full array, VMEM-resident across all grid steps
        return pl.BlockSpec(a.shape, lambda i: (0,) * a.ndim)

    flops = 2 * B * (IN_FEATURES * 128 + 128 * 32 + 32 * LATENT + LATENT * LATENT)
    bytes_accessed = (x.size * x.dtype.itemsize
                      + sum(a.size * a.dtype.itemsize for a in weights)
                      + B * LATENT * 4)

    out = pl.pallas_call(
        _proprio_kernel,
        out_shape=jax.ShapeDtypeStruct((B, LATENT), jnp.float32),
        grid=grid,
        in_specs=[pl.BlockSpec((tb, IN_FEATURES), lambda i: (i, 0))]
                 + [resident(a) for a in weights],
        out_specs=pl.BlockSpec((tb, LATENT), lambda i: (i, 0)),
        compiler_params=pltpu.CompilerParams(
            dimension_semantics=("parallel",),
            vmem_limit_bytes=VMEM_LIMIT_BYTES),
        cost_estimate=pl.CostEstimate(flops=flops, transcendentals=B,
                                      bytes_accessed=bytes_accessed),
    )(x, *weights)
    return out


def init_params(key, latent_size=LATENT):
    """Deterministic synthetic parameters, stored as (in, out) matrices."""
    ks = jax.random.split(key, 7)
    scale = 0.05
    # Matmul weights stored bf16 (single-pass MXU feed); biases stay f32.
    w1 = (scale * jax.random.normal(ks[0], (IN_FEATURES, 128), jnp.float32)
          ).astype(jnp.bfloat16)                                   # bias=False
    w2 = (scale * jax.random.normal(ks[1], (128, 32), jnp.float32)).astype(jnp.bfloat16)
    b2 = scale * jax.random.normal(ks[2], (1, 32), jnp.float32)
    w3 = (scale * jax.random.normal(ks[3], (32, latent_size), jnp.float32)).astype(jnp.bfloat16)
    b3 = scale * jax.random.normal(ks[4], (1, latent_size), jnp.float32)
    w4 = (scale * jax.random.normal(ks[5], (latent_size, latent_size), jnp.float32)).astype(jnp.bfloat16)
    b4 = scale * jax.random.normal(ks[6], (1, latent_size), jnp.float32)
    return (w1, w2, b2, w3, b3, w4, b4)


def reference_forward(inertial, params):
    """Pure-JAX reference mirroring the kernel's numerics (bf16 matmul feeds)."""
    w1, w2, b2, w3, b3, w4, b4 = params
    B = inertial.shape[0]
    x = inertial.reshape(B, IN_FEATURES).astype(jnp.bfloat16)
    h = jnp.maximum(jnp.dot(x, w1, preferred_element_type=jnp.float32), 0.0)
    h = jnp.maximum(jnp.dot(h.astype(jnp.bfloat16), w2,
                            preferred_element_type=jnp.float32) + b2, 0.0)
    h = jnp.maximum(jnp.dot(h.astype(jnp.bfloat16), w3,
                            preferred_element_type=jnp.float32) + b3, 0.0)
    h = jnp.dot(h.astype(jnp.bfloat16), w4,
                preferred_element_type=jnp.float32) + b4
    sq = jnp.sum(h * h, axis=-1, keepdims=True)
    return h * jax.lax.rsqrt(jnp.maximum(sq, 1e-24))


if __name__ == "__main__":
    key = jax.random.PRNGKey(0)
    k_in, k_p = jax.random.split(key)

    B = 8  # small batch (multiple of 8 sublanes)
    inertial = jax.random.normal(k_in, (B, 201, 6), jnp.float32)
    params = init_params(k_p)

    out = jax.block_until_ready(proprioception_forward(inertial, params))
    ref = reference_forward(inertial, params)

    assert out.shape == (B, LATENT)
    assert bool(jnp.all(jnp.isfinite(out)))
    # bf16 matmul feeds + possible precision-mode differences between Pallas MXU
    # and the XLA reference -> modest tolerance; real bugs would be O(0.1) off.
    assert jnp.allclose(out, ref, atol=1e-2, rtol=1e-2), "mismatch vs JAX reference"
    # rows should be unit-norm
    assert jnp.allclose(jnp.linalg.norm(out, axis=-1), 1.0, atol=1e-3)

    print("KERNEL_OK")
</pallas_src>

<mosaic_0001>
module attributes {stable_mosaic.version = 11 : i64} {
  func.func @_proprio_kernel(%arg0: i32, %arg1: memref<8x1206xf32, #tpu.memory_space<vmem>>, %arg2: memref<1206x128xbf16, #tpu.memory_space<vmem>>, %arg3: memref<128x32xbf16, #tpu.memory_space<vmem>>, %arg4: memref<1x32xf32, #tpu.memory_space<vmem>>, %arg5: memref<32x64xbf16, #tpu.memory_space<vmem>>, %arg6: memref<1x64xf32, #tpu.memory_space<vmem>>, %arg7: memref<64x64xbf16, #tpu.memory_space<vmem>>, %arg8: memref<1x64xf32, #tpu.memory_space<vmem>>, %arg9: memref<8x64xf32, #tpu.memory_space<vmem>>) attributes {dimension_semantics = [#tpu.dimension_semantics<parallel>], iteration_bounds = array<i64: 1>, scalar_prefetch = 0 : i64, scratch_operands = 0 : i64, tpu.core_type = #tpu.core_type<tc>, window_params = [{transform_indices = @transform_0, window_bounds = array<i64: 8, 1206>}, {pipeline_mode = #tpu.pipeline_mode<synchronous>, transform_indices = @transform_1, window_bounds = array<i64: 1206, 128>}, {pipeline_mode = #tpu.pipeline_mode<synchronous>, transform_indices = @transform_2, window_bounds = array<i64: 128, 32>}, {pipeline_mode = #tpu.pipeline_mode<synchronous>, transform_indices = @transform_3, window_bounds = array<i64: 1, 32>}, {pipeline_mode = #tpu.pipeline_mode<synchronous>, transform_indices = @transform_4, window_bounds = array<i64: 32, 64>}, {pipeline_mode = #tpu.pipeline_mode<synchronous>, transform_indices = @transform_5, window_bounds = array<i64: 1, 64>}, {pipeline_mode = #tpu.pipeline_mode<synchronous>, transform_indices = @transform_6, window_bounds = array<i64: 64, 64>}, {pipeline_mode = #tpu.pipeline_mode<synchronous>, transform_indices = @transform_7, window_bounds = array<i64: 1, 64>}, {transform_indices = @transform_8, window_bounds = array<i64: 8, 64>}]} {
    %c0 = arith.constant 0 : index
    %c0_0 = arith.constant 0 : index
    %0 = vector.load %arg1[%c0, %c0_0] : memref<8x1206xf32, #tpu.memory_space<vmem>>, vector<8x1206xf32>
    %1 = arith.truncf %0 : vector<8x1206xf32> to vector<8x1206xbf16>
    %c0_1 = arith.constant 0 : index
    %c0_2 = arith.constant 0 : index
    %2 = vector.load %arg2[%c0_1, %c0_2] : memref<1206x128xbf16, #tpu.memory_space<vmem>>, vector<1206x128xbf16>
    %cst = arith.constant dense<0.000000e+00> : vector<8x128xf32>
    %3 = tpu.matmul %1, %2, %cst {dimension_numbers = #tpu.dot_dimension_numbers<[1], [0], [0], [1], [0, 0, 1, 1], [], []>} : vector<8x1206xbf16>, vector<1206x128xbf16>, vector<8x128xf32> -> vector<8x128xf32>
    %cst_3 = arith.constant 0.000000e+00 : f32
    %4 = vector.broadcast %cst_3 : f32 to vector<8x128xf32>
    %5 = arith.maximumf %3, %4 : vector<8x128xf32>
    %6 = arith.truncf %5 : vector<8x128xf32> to vector<8x128xbf16>
    %c0_4 = arith.constant 0 : index
    %c0_5 = arith.constant 0 : index
    %7 = vector.load %arg3[%c0_4, %c0_5] : memref<128x32xbf16, #tpu.memory_space<vmem>>, vector<128x32xbf16>
    %cst_6 = arith.constant dense<0.000000e+00> : vector<8x32xf32>
    %8 = tpu.matmul %6, %7, %cst_6 {dimension_numbers = #tpu.dot_dimension_numbers<[1], [0], [0], [1], [0, 0, 1, 1], [], []>} : vector<8x128xbf16>, vector<128x32xbf16>, vector<8x32xf32> -> vector<8x32xf32>
    %c0_7 = arith.constant 0 : index
    %c0_8 = arith.constant 0 : index
    %9 = vector.load %arg4[%c0_7, %c0_8] : memref<1x32xf32, #tpu.memory_space<vmem>>, vector<1x32xf32>
    %10 = vector.broadcast %9 : vector<1x32xf32> to vector<8x32xf32>
    %11 = arith.addf %8, %10 : vector<8x32xf32>
    %cst_9 = arith.constant 0.000000e+00 : f32
    %12 = vector.broadcast %cst_9 : f32 to vector<8x32xf32>
    %13 = arith.maximumf %11, %12 : vector<8x32xf32>
    %14 = arith.truncf %13 : vector<8x32xf32> to vector<8x32xbf16>
    %c0_10 = arith.constant 0 : index
    %c0_11 = arith.constant 0 : index
    %15 = vector.load %arg5[%c0_10, %c0_11] : memref<32x64xbf16, #tpu.memory_space<vmem>>, vector<32x64xbf16>
    %cst_12 = arith.constant dense<0.000000e+00> : vector<8x64xf32>
    %16 = tpu.matmul %14, %15, %cst_12 {dimension_numbers = #tpu.dot_dimension_numbers<[1], [0], [0], [1], [0, 0, 1, 1], [], []>} : vector<8x32xbf16>, vector<32x64xbf16>, vector<8x64xf32> -> vector<8x64xf32>
    %c0_13 = arith.constant 0 : index
    %c0_14 = arith.constant 0 : index
    %17 = vector.load %arg6[%c0_13, %c0_14] : memref<1x64xf32, #tpu.memory_space<vmem>>, vector<1x64xf32>
    %18 = vector.broadcast %17 : vector<1x64xf32> to vector<8x64xf32>
    %19 = arith.addf %16, %18 : vector<8x64xf32>
    %cst_15 = arith.constant 0.000000e+00 : f32
    %20 = vector.broadcast %cst_15 : f32 to vector<8x64xf32>
    %21 = arith.maximumf %19, %20 : vector<8x64xf32>
    %22 = arith.truncf %21 : vector<8x64xf32> to vector<8x64xbf16>
    %c0_16 = arith.constant 0 : index
    %c0_17 = arith.constant 0 : index
    %23 = vector.load %arg7[%c0_16, %c0_17] : memref<64x64xbf16, #tpu.memory_space<vmem>>, vector<64x64xbf16>
    %cst_18 = arith.constant dense<0.000000e+00> : vector<8x64xf32>
    %24 = tpu.matmul %22, %23, %cst_18 {dimension_numbers = #tpu.dot_dimension_numbers<[1], [0], [0], [1], [0, 0, 1, 1], [], []>} : vector<8x64xbf16>, vector<64x64xbf16>, vector<8x64xf32> -> vector<8x64xf32>
    %c0_19 = arith.constant 0 : index
    %c0_20 = arith.constant 0 : index
    %25 = vector.load %arg8[%c0_19, %c0_20] : memref<1x64xf32, #tpu.memory_space<vmem>>, vector<1x64xf32>
    %26 = vector.broadcast %25 : vector<1x64xf32> to vector<8x64xf32>
    %27 = arith.addf %24, %26 : vector<8x64xf32>
    %28 = arith.mulf %27, %27 : vector<8x64xf32>
    %cst_21 = arith.constant dense<0.000000e+00> : vector<8xf32>
    %29 = vector.multi_reduction <add>, %28, %cst_21 [1] : vector<8x64xf32> to vector<8xf32>
    %30 = vector.shape_cast %29 : vector<8xf32> to vector<8x1xf32>
    %cst_22 = arith.constant 1.000000e-24 : f32
    %31 = vector.broadcast %cst_22 : f32 to vector<8x1xf32>
    %32 = arith.maximumf %30, %31 : vector<8x1xf32>
    %33 = math.rsqrt %32 : vector<8x1xf32>
    %34 = vector.broadcast %33 : vector<8x1xf32> to vector<8x64xf32>
    %35 = arith.mulf %27, %34 : vector<8x64xf32>
    %c0_23 = arith.constant 0 : index
    %c0_24 = arith.constant 0 : index
    %36 = vector.load %arg9[%c0_23, %c0_24] : memref<8x64xf32, #tpu.memory_space<vmem>>, vector<8x64xf32>
    tpu.vector_store %arg9[%c0_23, %c0_24], %35 {strides = array<i32>} : memref<8x64xf32, #tpu.memory_space<vmem>>, vector<8x64xf32>,
    return
  }
  func.func @transform_0(%arg0: i32) -> (i32, i32) {
    %c0_i32 = arith.constant 0 : i32
    %c0_i32_0 = arith.constant 0 : i32
    return %arg0, %c0_i32 : i32, i32
  }
  func.func @transform_1(%arg0: i32) -> (i32, i32) {
    %c0_i32 = arith.constant 0 : i32
    %c0_i32_0 = arith.constant 0 : i32
    %c0_i32_1 = arith.constant 0 : i32
    return %c0_i32, %c0_i32_0 : i32, i32
  }
  func.func @transform_2(%arg0: i32) -> (i32, i32) {
    %c0_i32 = arith.constant 0 : i32
    %c0_i32_0 = arith.constant 0 : i32
    %c0_i32_1 = arith.constant 0 : i32
    return %c0_i32, %c0_i32_0 : i32, i32
  }
  func.func @transform_3(%arg0: i32) -> (i32, i32) {
    %c0_i32 = arith.constant 0 : i32
    %c0_i32_0 = arith.constant 0 : i32
    %c0_i32_1 = arith.constant 0 : i32
    return %c0_i32, %c0_i32_0 : i32, i32
  }
  func.func @transform_4(%arg0: i32) -> (i32, i32) {
    %c0_i32 = arith.constant 0 : i32
    %c0_i32_0 = arith.constant 0 : i32
    %c0_i32_1 = arith.constant 0 : i32
    return %c0_i32, %c0_i32_0 : i32, i32
  }
  func.func @transform_5(%arg0: i32) -> (i32, i32) {
    %c0_i32 = arith.constant 0 : i32
    %c0_i32_0 = arith.constant 0 : i32
    %c0_i32_1 = arith.constant 0 : i32
    return %c0_i32, %c0_i32_0 : i32, i32
  }
  func.func @transform_6(%arg0: i32) -> (i32, i32) {
    %c0_i32 = arith.constant 0 : i32
    %c0_i32_0 = arith.constant 0 : i32
    %c0_i32_1 = arith.constant 0 : i32
    return %c0_i32, %c0_i32_0 : i32, i32
  }
  func.func @transform_7(%arg0: i32) -> (i32, i32) {
    %c0_i32 = arith.constant 0 : i32
    %c0_i32_0 = arith.constant 0 : i32
    %c0_i32_1 = arith.constant 0 : i32
    return %c0_i32, %c0_i32_0 : i32, i32
  }
  func.func @transform_8(%arg0: i32) -> (i32, i32) {
    %c0_i32 = arith.constant 0 : i32
    %c0_i32_0 = arith.constant 0 : i32
    return %arg0, %c0_i32 : i32, i32
  }
}

</mosaic_0001>

<llo_original>
// kernel: tpu_custom_call.1
$region0: #{tpu_custom_call.1}
  #allocation0 [shape = 'u32[]', space=smem, size = 0x4, offset = 0x4, fixed_abs, tag = 'smem constant byte address 0x4 - core index']
  #allocation1 [shape = 'u32[144,128]{1,0:T(1,128)}', space=vmem, size = 0x12000, scoped, tag = 'internal scratch']
  %s0 = inlined_call_operand.vmem [shape: f32[8,1206], index: 0, kind: input, shape index: {}]
  %s1 = inlined_call_operand.hbm [shape: bf16[1206,128], index: 1, kind: input, shape index: {}]
  %s2 = inlined_call_operand.vmem [shape: bf16[128,32], index: 2, kind: input, shape index: {}]
  %s3 = inlined_call_operand.vmem [shape: f32[1,32], index: 3, kind: input, shape index: {}]
  %s4 = inlined_call_operand.hbm [shape: bf16[32,64], index: 4, kind: input, shape index: {}]
  %s5 = inlined_call_operand.vmem [shape: f32[1,64], index: 5, kind: input, shape index: {}]
  %s6 = inlined_call_operand.hbm [shape: bf16[64,64], index: 6, kind: input, shape index: {}]
  %s7 = inlined_call_operand.vmem [shape: f32[1,64], index: 7, kind: input, shape index: {}]
  %s8 = inlined_call_operand.hbm [shape: f32[8,64], index: 8, kind: output, shape index: {}]
  %s9 = sld [smem:[#allocation0]]
  $region54: #{tpu_custom_call.1} parent=0
    _
  %s11 = ssub.s32 1, %s9
  %s12 = scalar_select 0, %s11, %s9
  $region1: #{tpu_custom_call.1} parent=0
    #allocation2 [shape = 'u8[309248]{0}', space=vmem, size = 0x4b800, scoped, tag = 'input window, operand 1, single buffered']
    #allocation3 [shape = 's32[1]{0}', space=sflag, size = 0x4, scoped, tag = 'scoped memory for tpu_custom_call.1']
    #allocation4 [shape = 's32[1]{0}', space=sflag, size = 0x4, scoped, tag = 'scoped memory for tpu_custom_call.1']
    #allocation5 [shape = 'u8[8192]{0}', space=vmem, size = 0x2000, scoped, tag = 'input window, operand 4, single buffered']
    #allocation6 [shape = 's32[1]{0}', space=sflag, size = 0x4, scoped, tag = 'scoped memory for tpu_custom_call.1']
    #allocation7 [shape = 'u8[16384]{0}', space=vmem, size = 0x4000, scoped, tag = 'input window, operand 6, single buffered']
    #allocation8 [shape = 'u8[4096]{0}', space=vmem, size = 0x1000, scoped, tag = 'output window, operand 0, single buffered']
    %13 = vsyncpa [#allocation3], 0
    %14 = vsyncpa [#allocation6], 0
    %15 = vsyncpa [#allocation4], 0
    // Predicated region
    $region2: #{tpu_custom_call.1} parent=1 // pred_check
      _
    $region3: #{tpu_custom_call.1} parent=1 // pred_check_branch
      %17 = sbr.rel (0) target = $region5
    $region4: #{tpu_custom_call.1} parent=1 // pred_region
      _
    $region5: #{tpu_custom_call.1} parent=1 // pred_fallthru
      _
    // Predicated region
    $region6: #{tpu_custom_call.1} parent=1 // pred_check
      _
    $region7: #{tpu_custom_call.1} parent=1 // pred_check_branch
      %19 = sbr.rel (0) target = $region9
    $region8: #{tpu_custom_call.1} parent=1 // pred_region
      %s21 = ssub.s32 9664, 9664
      %22 = vsyncadd [#allocation3], %s21
      %s23 = sshll.u32 [#allocation2], 4
      %s24 = int_to_ptr.vmem [resolvable:$true] %s23
      %29 = dma.hbm_to_vmem [thread:$0]  %s1, 9664, %s24, [#allocation3], 64, 64, 4
    $region9: #{tpu_custom_call.1} parent=1 // pred_fallthru
      _
    // Predicated region
    $region10: #{tpu_custom_call.1} parent=1 // pred_check
      _
    $region11: #{tpu_custom_call.1} parent=1 // pred_check_branch
      %31 = sbr.rel (0) target = $region13
    $region12: #{tpu_custom_call.1} parent=1 // pred_region
      _
    $region13: #{tpu_custom_call.1} parent=1 // pred_fallthru
      _
    // Predicated region
    $region14: #{tpu_custom_call.1} parent=1 // pred_check
      _
    $region15: #{tpu_custom_call.1} parent=1 // pred_check_branch
      %33 = sbr.rel (0) target = $region17
    $region16: #{tpu_custom_call.1} parent=1 // pred_region
      _
    $region17: #{tpu_custom_call.1} parent=1 // pred_fallthru
      _
    // Predicated region
    $region18: #{tpu_custom_call.1} parent=1 // pred_check
      _
    $region19: #{tpu_custom_call.1} parent=1 // pred_check_branch
      %35 = sbr.rel (0) target = $region21
    $region20: #{tpu_custom_call.1} parent=1 // pred_region
      %s37 = ssub.s32 256, 256
      %38 = vsyncadd [#allocation6], %s37
      %s39 = sshll.u32 [#allocation5], 4
      %s40 = int_to_ptr.vmem [resolvable:$true] %s39
      %45 = dma.hbm_to_vmem [thread:$0]  %s4, 256, %s40, [#allocation6], 64, 64, 4
    $region21: #{tpu_custom_call.1} parent=1 // pred_fallthru
      _
    // Predicated region
    $region22: #{tpu_custom_call.1} parent=1 // pred_check
      _
    $region23: #{tpu_custom_call.1} parent=1 // pred_check_branch
      %47 = sbr.rel (0) target = $region25
    $region24: #{tpu_custom_call.1} parent=1 // pred_region
      _
    $region25: #{tpu_custom_call.1} parent=1 // pred_fallthru
      _
    // Predicated region
    $region26: #{tpu_custom_call.1} parent=1 // pred_check
      _
    $region27: #{tpu_custom_call.1} parent=1 // pred_check_branch
      %49 = sbr.rel (0) target = $region29
    $region28: #{tpu_custom_call.1} parent=1 // pred_region
      %s51 = ssub.s32 512, 512
      %52 = vsyncadd [#allocation6], %s51
      %s53 = sshll.u32 [#allocation7], 4
      %s54 = int_to_ptr.vmem [resolvable:$true] %s53
      %59 = dma.hbm_to_vmem [thread:$0]  %s6, 512, %s54, [#allocation6], 64, 64, 4
    $region29: #{tpu_custom_call.1} parent=1 // pred_fallthru
      _
    // Predicated region
    $region30: #{tpu_custom_call.1} parent=1 // pred_check
      _
    $region31: #{tpu_custom_call.1} parent=1 // pred_check_branch
      %61 = sbr.rel (0) target = $region33
    $region32: #{tpu_custom_call.1} parent=1 // pred_region
      _
    $region33: #{tpu_custom_call.1} parent=1 // pred_fallthru
      _
    // Predicated region
    $region34: #{tpu_custom_call.1} parent=1 // pred_check
      _
    $region35: #{tpu_custom_call.1} parent=1 // pred_check_branch
      %63 = sbr.rel (0) target = $region37
    $region36: #{tpu_custom_call.1} parent=1 // pred_region
      %64 = dma.done [#allocation3], 9664
    $region37: #{tpu_custom_call.1} parent=1 // pred_fallthru
      _
    // Predicated region
    $region38: #{tpu_custom_call.1} parent=1 // pred_check
      _
    $region39: #{tpu_custom_call.1} parent=1 // pred_check_branch
      %66 = sbr.rel (0) target = $region41
    $region40: #{tpu_custom_call.1} parent=1 // pred_region
      %67 = dma.done [#allocation6], 256
    $region41: #{tpu_custom_call.1} parent=1 // pred_fallthru
      _
    // Predicated region
    $region42: #{tpu_custom_call.1} parent=1 // pred_check
      _
    $region43: #{tpu_custom_call.1} parent=1 // pred_check_branch
      %69 = sbr.rel (0) target = $region45
    $region44: #{tpu_custom_call.1} parent=1 // pred_region
      %70 = dma.done [#allocation6], 512
    $region45: #{tpu_custom_call.1} parent=1 // pred_fallthru
      _
    %v72 = vld [vmem:[%s0] sm:$0xff]
    %v73 = vld [vmem:[%s0 + $0x8] sm:$0xff]
    %v74 = vld [vmem:[%s0 + $0x10] sm:$0xff]
    %v75 = vld [vmem:[%s0 + $0x18] sm:$0xff]
    %v76 = vld [vmem:[%s0 + $0x20] sm:$0xff]
    %v77 = vld [vmem:[%s0 + $0x28] sm:$0xff]
    %v78 = vld [vmem:[%s0 + $0x30] sm:$0xff]
    %v79 = vld [vmem:[%s0 + $0x38] sm:$0xff]
    %v80 = vld [vmem:[%s0 + $0x40] sm:$0xff]
    %v81 = vld [vmem:[%s0 + $0x48] sm:$0xff]
    %v82 = vpack.c.bf16 %v72, %v72
    %v83 = vpack.c.bf16 %v73, %v73
    %v84 = vpack.c.bf16 %v74, %v74
    %v85 = vpack.c.bf16 %v75, %v75
    %v86 = vpack.c.bf16 %v76, %v76
    %v87 = vpack.c.bf16 %v77, %v77
    %v88 = vpack.c.bf16 %v78, %v78
    %v89 = vpack.c.bf16 %v79, %v79
    %v90 = vpack.c.bf16 %v80, %v80
    %v91 = vpack.c.bf16 %v81, %v81
    %v92 = vld [vmem:[#allocation2] sm:$0xf]
    %v93 = vld [vmem:[#allocation2 + $0x4] sm:$0xf]
    %v94 = vld [vmem:[#allocation2 + $0x8] sm:$0xf]
    %v95 = vld [vmem:[#allocation2 + $0xc] sm:$0xf]
    %v96 = vld [vmem:[#allocation2 + $0x10] sm:$0xf]
    %v97 = vld [vmem:[#allocation2 + $0x14] sm:$0xf]
    %v98 = vld [vmem:[#allocation2 + $0x18] sm:$0xf]
    %v99 = vld [vmem:[#allocation2 + $0x1c] sm:$0xf]
    %v100 = vld [vmem:[#allocation2 + $0x20] sm:$0xf]
    %v101 = vld [vmem:[#allocation2 + $0x24] sm:$0xf]
    %v102 = vld [vmem:[#allocation2 + $0x28] sm:$0xf]
    %v103 = vld [vmem:[#allocation2 + $0x2c] sm:$0xf]
    %v104 = vld [vmem:[#allocation2 + $0x30] sm:$0xf]
    %v105 = vld [vmem:[#allocation2 + $0x34] sm:$0xf]
    %v106 = vld [vmem:[#allocation2 + $0x38] sm:$0xf]
    %v107 = vld [vmem:[#allocation2 + $0x3c] sm:$0xf]
    %v108 = vld [vmem:[#allocation2 + $0x40] sm:$0xf]
    %v109 = vld [vmem:[#allocation2 + $0x44] sm:$0xf]
    %v110 = vld [vmem:[#allocation2 + $0x48] sm:$0xf]
    %v111 = vld [vmem:[#allocation2 + $0x4c] sm:$0xf]
    %v112 = vld [vmem:[#allocation2 + $0x50] sm:$0xf]
    %v113 = vld [vmem:[#allocation2 + $0x54] sm:$0xf]
    %v114 = vld [vmem:[#allocation2 + $0x58] sm:$0xf]
    %v115 = vld [vmem:[#allocation2 + $0x5c] sm:$0xf]
    %v116 = vld [vmem:[#allocation2 + $0x60] sm:$0xf]
    %v117 = vld [vmem:[#allocation2 + $0x64] sm:$0xf]
    %v118 = vld [vmem:[#allocation2 + $0x68] sm:$0xf]
    %v119 = vld [vmem:[#allocation2 + $0x6c] sm:$0xf]
    %v120 = vld [vmem:[#allocation2 + $0x70] sm:$0xf]
    %v121 = vld [vmem:[#allocation2 + $0x74] sm:$0xf]
    %v122 = vld [vmem:[#allocation2 + $0x78] sm:$0xf]
    %v123 = vld [vmem:[#allocation2 + $0x7c] sm:$0xf]
    %v124 = vld [vmem:[#allocation2 + $0x80] sm:$0xf]
    %v125 = vld [vmem:[#allocation2 + $0x84] sm:$0xf]
    %v126 = vld [vmem:[#allocation2 + $0x88] sm:$0xf]
    %v127 = vld [vmem:[#allocation2 + $0x8c] sm:$0xf]
    %v128 = vld [vmem:[#allocation2 + $0x90] sm:$0xf]
    %v129 = vld [vmem:[#allocation2 + $0x94] sm:$0xf]
    %v130 = vld [vmem:[#allocation2 + $0x98] sm:$0xf]
    %v131 = vld [vmem:[#allocation2 + $0x9c] sm:$0xf]
    %v132 = vld [vmem:[#allocation2 + $0xa0] sm:$0xf]
    %v133 = vld [vmem:[#allocation2 + $0xa4] sm:$0xf]
    %v134 = vld [vmem:[#allocation2 + $0xa8] sm:$0xf]
    %v135 = vld [vmem:[#allocation2 + $0xac] sm:$0xf]
    %v136 = vld [vmem:[#allocation2 + $0xb0] sm:$0xf]
    %v137 = vld [vmem:[#allocation2 + $0xb4] sm:$0xf]
    %v138 = vld [vmem:[#allocation2 + $0xb8] sm:$0xf]
    %v139 = vld [vmem:[#allocation2 + $0xbc] sm:$0xf]
    %v140 = vld [vmem:[#allocation2 + $0xc0] sm:$0xf]
    %v141 = vld [vmem:[#allocation2 + $0xc4] sm:$0xf]
    %v142 = vld [vmem:[#allocation2 + $0xc8] sm:$0xf]
    %v143 = vld [vmem:[#allocation2 + $0xcc] sm:$0xf]
    %v144 = vld [vmem:[#allocation2 + $0xd0] sm:$0xf]
    %v145 = vld [vmem:[#allocation2 + $0xd4] sm:$0xf]
    %v146 = vld [vmem:[#allocation2 + $0xd8] sm:$0xf]
    %v147 = vld [vmem:[#allocation2 + $0xdc] sm:$0xf]
    %v148 = vld [vmem:[#allocation2 + $0xe0] sm:$0xf]
    %v149 = vld [vmem:[#allocation2 + $0xe4] sm:$0xf]
    %v150 = vld [vmem:[#allocation2 + $0xe8] sm:$0xf]
    %v151 = vld [vmem:[#allocation2 + $0xec] sm:$0xf]
    %v152 = vld [vmem:[#allocation2 + $0xf0] sm:$0xf]
    %v153 = vld [vmem:[#allocation2 + $0xf4] sm:$0xf]
    %v154 = vld [vmem:[#allocation2 + $0xf8] sm:$0xf]
    %v155 = vld [vmem:[#allocation2 + $0xfc] sm:$0xf]
    %v156 = vld [vmem:[#allocation2 + $0x100] sm:$0xf]
    %v157 = vld [vmem:[#allocation2 + $0x104] sm:$0xf]
    %v158 = vld [vmem:[#allocation2 + $0x108] sm:$0xf]
    %v159 = vld [vmem:[#allocation2 + $0x10c] sm:$0xf]
    %v160 = vld [vmem:[#allocation2 + $0x110] sm:$0xf]
    %v161 = vld [vmem:[#allocation2 + $0x114] sm:$0xf]
    %v162 = vld [vmem:[#allocation2 + $0x118] sm:$0xf]
    %v163 = vld [vmem:[#allocation2 + $0x11c] sm:$0xf]
    %v164 = vld [vmem:[#allocation2 + $0x120] sm:$0xf]
    %v165 = vld [vmem:[#allocation2 + $0x124] sm:$0xf]
    %v166 = vld [vmem:[#allocation2 + $0x128] sm:$0xf]
    %v167 = vld [vmem:[#allocation2 + $0x12c] sm:$0xf]
    %v168 = vld [vmem:[#allocation2 + $0x130] sm:$0xf]
    %v169 = vld [vmem:[#allocation2 + $0x134] sm:$0xf]
    %v170 = vld [vmem:[#allocation2 + $0x138] sm:$0xf]
    %v171 = vld [vmem:[#allocation2 + $0x13c] sm:$0xf]
    %v172 = vld [vmem:[#allocation2 + $0x140] sm:$0xf]
    %v173 = vld [vmem:[#allocation2 + $0x144] sm:$0xf]
    %v174 = vld [vmem:[#allocation2 + $0x148] sm:$0xf]
    %v175 = vld [vmem:[#allocation2 + $0x14c] sm:$0xf]
    %v176 = vld [vmem:[#allocation2 + $0x150] sm:$0xf]
    %v177 = vld [vmem:[#allocation2 + $0x154] sm:$0xf]
    %v178 = vld [vmem:[#allocation2 + $0x158] sm:$0xf]
    %v179 = vld [vmem:[#allocation2 + $0x15c] sm:$0xf]
    %v180 = vld [vmem:[#allocation2 + $0x160] sm:$0xf]
    %v181 = vld [vmem:[#allocation2 + $0x164] sm:$0xf]
    %v182 = vld [vmem:[#allocation2 + $0x168] sm:$0xf]
    %v183 = vld [vmem:[#allocation2 + $0x16c] sm:$0xf]
    %v184 = vld [vmem:[#allocation2 + $0x170] sm:$0xf]
    %v185 = vld [vmem:[#allocation2 + $0x174] sm:$0xf]
    %v186 = vld [vmem:[#allocation2 + $0x178] sm:$0xf]
    %v187 = vld [vmem:[#allocation2 + $0x17c] sm:$0xf]
    %v188 = vld [vmem:[#allocation2 + $0x180] sm:$0xf]
    %v189 = vld [vmem:[#allocation2 + $0x184] sm:$0xf]
    %v190 = vld [vmem:[#allocation2 + $0x188] sm:$0xf]
    %v191 = vld [vmem:[#allocation2 + $0x18c] sm:$0xf]
    %v192 = vld [vmem:[#allocation2 + $0x190] sm:$0xf]
    %v193 = vld [vmem:[#allocation2 + $0x194] sm:$0xf]
    %v194 = vld [vmem:[#allocation2 + $0x198] sm:$0xf]
    %v195 = vld [vmem:[#allocation2 + $0x19c] sm:$0xf]
    %v196 = vld [vmem:[#allocation2 + $0x1a0] sm:$0xf]
    %v197 = vld [vmem:[#allocation2 + $0x1a4] sm:$0xf]
    %v198 = vld [vmem:[#allocation2 + $0x1a8] sm:$0xf]
    %v199 = vld [vmem:[#allocation2 + $0x1ac] sm:$0xf]
    %v200 = vld [vmem:[#allocation2 + $0x1b0] sm:$0xf]
    %v201 = vld [vmem:[#allocation2 + $0x1b4] sm:$0xf]
    %v202 = vld [vmem:[#allocation2 + $0x1b8] sm:$0xf]
    %v203 = vld [vmem:[#allocation2 + $0x1bc] sm:$0xf]
    %v204 = vld [vmem:[#allocation2 + $0x1c0] sm:$0xf]
    %v205 = vld [vmem:[#allocation2 + $0x1c4] sm:$0xf]
    %v206 = vld [vmem:[#allocation2 + $0x1c8] sm:$0xf]
    %v207 = vld [vmem:[#allocation2 + $0x1cc] sm:$0xf]
    %v208 = vld [vmem:[#allocation2 + $0x1d0] sm:$0xf]
    %v209 = vld [vmem:[#allocation2 + $0x1d4] sm:$0xf]
    %v210 = vld [vmem:[#allocation2 + $0x1d8] sm:$0xf]
    %v211 = vld [vmem:[#allocation2 + $0x1dc] sm:$0xf]
    %v212 = vld [vmem:[#allocation2 + $0x1e0] sm:$0xf]
    %v213 = vld [vmem:[#allocation2 + $0x1e4] sm:$0xf]
    %v214 = vld [vmem:[#allocation2 + $0x1e8] sm:$0xf]
    %v215 = vld [vmem:[#allocation2 + $0x1ec] sm:$0xf]
    %v216 = vld [vmem:[#allocation2 + $0x1f0] sm:$0xf]
    %v217 = vld [vmem:[#allocation2 + $0x1f4] sm:$0xf]
    %v218 = vld [vmem:[#allocation2 + $0x1f8] sm:$0xf]
    %v219 = vld [vmem:[#allocation2 + $0x1fc] sm:$0xf]
    %v220 = vld [vmem:[#allocation2 + $0x200] sm:$0xf]
    %v221 = vld [vmem:[#allocation2 + $0x204] sm:$0xf]
    %v222 = vld [vmem:[#allocation2 + $0x208] sm:$0xf]
    %v223 = vld [vmem:[#allocation2 + $0x20c] sm:$0xf]
    %v224 = vld [vmem:[#allocation2 + $0x210] sm:$0xf]
    %v225 = vld [vmem:[#allocation2 + $0x214] sm:$0xf]
    %v226 = vld [vmem:[#allocation2 + $0x218] sm:$0xf]
    %v227 = vld [vmem:[#allocation2 + $0x21c] sm:$0xf]
    %v228 = vld [vmem:[#allocation2 + $0x220] sm:$0xf]
    %v229 = vld [vmem:[#allocation2 + $0x224] sm:$0xf]
    %v230 = vld [vmem:[#allocation2 + $0x228] sm:$0xf]
    %v231 = vld [vmem:[#allocation2 + $0x22c] sm:$0xf]
    %v232 = vld [vmem:[#allocation2 + $0x230] sm:$0xf]
    %v233 = vld [vmem:[#allocation2 + $0x234] sm:$0xf]
    %v234 = vld [vmem:[#allocation2 + $0x238] sm:$0xf]
    %v235 = vld [vmem:[#allocation2 + $0x23c] sm:$0xf]
    %v236 = vld [vmem:[#allocation2 + $0x240] sm:$0xf]
    %v237 = vld [vmem:[#allocation2 + $0x244] sm:$0xf]
    %v238 = vld [vmem:[#allocation2 + $0x248] sm:$0xf]
    %v239 = vld [vmem:[#allocation2 + $0x24c] sm:$0xf]
    %v240 = vld [vmem:[#allocation2 + $0x250] sm:$0xf]
    %v241 = vld [vmem:[#allocation2 + $0x254] sm:$0xf]
    %v242 = vld [vmem:[#allocation2 + $0x258] sm:$0x7]
    %v394 = vunpack.c.l.b16 %v92
    %v395 = vunpack.c.l.b16 %v93
    %v396 = vunpack.c.l.b16 %v94
    %v397 = vunpack.c.l.b16 %v95
    %v398 = vunpack.c.l.b16 %v96
    %v399 = vunpack.c.l.b16 %v97
    %v400 = vunpack.c.l.b16 %v98
    %v401 = vunpack.c.l.b16 %v99
    %v402 = vunpack.c.l.b16 %v100
    %v403 = vunpack.c.l.b16 %v101
    %v404 = vunpack.c.l.b16 %v102
    %v405 = vunpack.c.l.b16 %v103
    %v406 = vunpack.c.l.b16 %v104
    %v407 = vunpack.c.l.b16 %v105
    %v408 = vunpack.c.l.b16 %v106
    %v409 = vunpack.c.l.b16 %v107
    %v410 = vunpack.c.l.b16 %v108
    %v411 = vunpack.c.l.b16 %v109
    %v412 = vunpack.c.l.b16 %v110
    %v413 = vunpack.c.l.b16 %v111
    %v414 = vunpack.c.l.b16 %v112
    %v415 = vunpack.c.l.b16 %v113
    %v416 = vunpack.c.l.b16 %v114
    %v417 = vunpack.c.l.b16 %v115
    %v418 = vunpack.c.l.b16 %v116
    %v419 = vunpack.c.l.b16 %v117
    %v420 = vunpack.c.l.b16 %v118
    %v421 = vunpack.c.l.b16 %v119
    %v422 = vunpack.c.l.b16 %v120
    %v423 = vunpack.c.l.b16 %v121
    %v424 = vunpack.c.l.b16 %v122
    %v425 = vunpack.c.l.b16 %v123
    %v426 = vunpack.c.l.b16 %v124
    %v427 = vunpack.c.l.b16 %v125
    %v428 = vunpack.c.l.b16 %v126
    %v429 = vunpack.c.l.b16 %v127
    %v430 = vunpack.c.l.b16 %v128
    %v431 = vunpack.c.l.b16 %v129
    %v432 = vunpack.c.l.b16 %v130
    %v433 = vunpack.c.l.b16 %v131
    %v434 = vunpack.c.l.b16 %v132
    %v435 = vunpack.c.l.b16 %v133
    %v436 = vunpack.c.l.b16 %v134
    %v437 = vunpack.c.l.b16 %v135
    %v438 = vunpack.c.l.b16 %v136
    %v439 = vunpack.c.l.b16 %v137
    %v440 = vunpack.c.l.b16 %v138
    %v441 = vunpack.c.l.b16 %v139
    %v442 = vunpack.c.l.b16 %v140
    %v443 = vunpack.c.l.b16 %v141
    %v444 = vunpack.c.l.b16 %v142
    %v445 = vunpack.c.l.b16 %v143
    %v446 = vunpack.c.l.b16 %v144
    %v447 = vunpack.c.l.b16 %v145
    %v448 = vunpack.c.l.b16 %v146
    %v449 = vunpack.c.l.b16 %v147
    %v450 = vunpack.c.l.b16 %v148
    %v451 = vunpack.c.l.b16 %v149
    %v452 = vunpack.c.l.b16 %v150
    %v453 = vunpack.c.l.b16 %v151
    %v454 = vunpack.c.l.b16 %v152
    %v455 = vunpack.c.l.b16 %v153
    %v456 = vunpack.c.l.b16 %v154
    %v457 = vunpack.c.l.b16 %v155
    %v458 = vunpack.c.l.b16 %v156
    %v459 = vunpack.c.l.b16 %v157
    %v460 = vunpack.c.l.b16 %v158
    %v461 = vunpack.c.l.b16 %v159
    %v462 = vunpack.c.l.b16 %v160
    %v463 = vunpack.c.l.b16 %v161
    %v464 = vunpack.c.l.b16 %v162
    %v465 = vunpack.c.l.b16 %v163
    %v466 = vunpack.c.l.b16 %v164
    %v467 = vunpack.c.l.b16 %v165
    %v468 = vunpack.c.l.b16 %v166
    %v469 = vunpack.c.l.b16 %v167
    %v470 = vunpack.c.l.b16 %v168
    %v471 = vunpack.c.l.b16 %v169
    %v472 = vunpack.c.l.b16 %v170
    %v473 = vunpack.c.l.b16 %v171
    %v474 = vunpack.c.l.b16 %v172
    %v475 = vunpack.c.l.b16 %v173
    %v476 = vunpack.c.l.b16 %v174
    %v477 = vunpack.c.l.b16 %v175
    %v478 = vunpack.c.l.b16 %v176
    %v479 = vunpack.c.l.b16 %v177
    %v480 = vunpack.c.l.b16 %v178
    %v481 = vunpack.c.l.b16 %v179
    %v482 = vunpack.c.l.b16 %v180
    %v483 = vunpack.c.l.b16 %v181
    %v484 = vunpack.c.l.b16 %v182
    %v485 = vunpack.c.l.b16 %v183
    %v486 = vunpack.c.l.b16 %v184
    %v487 = vunpack.c.l.b16 %v185
    %v488 = vunpack.c.l.b16 %v186
    %v489 = vunpack.c.l.b16 %v187
    %v490 = vunpack.c.l.b16 %v188
    %v491 = vunpack.c.l.b16 %v189
    %v492 = vunpack.c.l.b16 %v190
    %v493 = vunpack.c.l.b16 %v191
    %v494 = vunpack.c.l.b16 %v192
    %v495 = vunpack.c.l.b16 %v193
    %v496 = vunpack.c.l.b16 %v194
    %v497 = vunpack.c.l.b16 %v195
    %v498 = vunpack.c.l.b16 %v196
    %v499 = vunpack.c.l.b16 %v197
    %v500 = vunpack.c.l.b16 %v198
    %v501 = vunpack.c.l.b16 %v199
    %v502 = vunpack.c.l.b16 %v200
    %v503 = vunpack.c.l.b16 %v201
    %v504 = vunpack.c.l.b16 %v202
    %v505 = vunpack.c.l.b16 %v203
    %v506 = vunpack.c.l.b16 %v204
    %v507 = vunpack.c.l.b16 %v205
    %v508 = vunpack.c.l.b16 %v206
    %v509 = vunpack.c.l.b16 %v207
    %v510 = vunpack.c.l.b16 %v208
    %v511 = vunpack.c.l.b16 %v209
    %v512 = vunpack.c.l.b16 %v210
    %v513 = vunpack.c.l.b16 %v211
    %v514 = vunpack.c.l.b16 %v212
    %v515 = vunpack.c.l.b16 %v213
    %v516 = vunpack.c.l.b16 %v214
    %v517 = vunpack.c.l.b16 %v215
    %v518 = vunpack.c.l.b16 %v216
    %v519 = vunpack.c.l.b16 %v217
    %v520 = vunpack.c.l.b16 %v218
    %v521 = vunpack.c.l.b16 %v219
    %v522 = vunpack.c.l.b16 %v220
    %v523 = vunpack.c.l.b16 %v221
    %v524 = vunpack.c.l.b16 %v222
    %v525 = vunpack.c.l.b16 %v223
    %v526 = vunpack.c.l.b16 %v224
    %v527 = vunpack.c.l.b16 %v225
    %v528 = vunpack.c.l.b16 %v226
    %v529 = vunpack.c.l.b16 %v227
    %v530 = vunpack.c.l.b16 %v228
    %v531 = vunpack.c.l.b16 %v229
    %v532 = vunpack.c.l.b16 %v230
    %v533 = vunpack.c.l.b16 %v231
    %v534 = vunpack.c.l.b16 %v232
    %v535 = vunpack.c.l.b16 %v233
    %v536 = vunpack.c.l.b16 %v234
    %v537 = vunpack.c.l.b16 %v235
    %v538 = vunpack.c.l.b16 %v236
    %v539 = vunpack.c.l.b16 %v237
    %v540 = vunpack.c.l.b16 %v238
    %v541 = vunpack.c.l.b16 %v239
    %v542 = vunpack.c.l.b16 %v240
    %v543 = vunpack.c.l.b16 %v241
    %v544 = vunpack.c.l.b16 %v242
    %v545 = vpack.c.b16 %v395, %v394
    %v546 = vpack.c.b16 %v397, %v396
    %v547 = vpack.c.b16 %v399, %v398
    %v548 = vpack.c.b16 %v401, %v400
    %v549 = vpack.c.b16 %v403, %v402
    %v550 = vpack.c.b16 %v405, %v404
    %v551 = vpack.c.b16 %v407, %v406
    %v552 = vpack.c.b16 %v409, %v408
    %v553 = vpack.c.b16 %v411, %v410
    %v554 = vpack.c.b16 %v413, %v412
    %v555 = vpack.c.b16 %v415, %v414
    %v556 = vpack.c.b16 %v417, %v416
    %v557 = vpack.c.b16 %v419, %v418
    %v558 = vpack.c.b16 %v421, %v420
    %v559 = vpack.c.b16 %v423, %v422
    %v560 = vpack.c.b16 %v425, %v424
    %v561 = vpack.c.b16 %v427, %v426
    %v562 = vpack.c.b16 %v429, %v428
    %v563 = vpack.c.b16 %v431, %v430
    %v564 = vpack.c.b16 %v433, %v432
    %v565 = vpack.c.b16 %v435, %v434
    %v566 = vpack.c.b16 %v437, %v436
    %v567 = vpack.c.b16 %v439, %v438
    %v568 = vpack.c.b16 %v441, %v440
    %v569 = vpack.c.b16 %v443, %v442
    %v570 = vpack.c.b16 %v445, %v444
    %v571 = vpack.c.b16 %v447, %v446
    %v572 = vpack.c.b16 %v449, %v448
    %v573 = vpack.c.b16 %v451, %v450
    %v574 = vpack.c.b16 %v453, %v452
    %v575 = vpack.c.b16 %v455, %v454
    %v576 = vpack.c.b16 %v457, %v456
    %v577 = vpack.c.b16 %v459, %v458
    %v578 = vpack.c.b16 %v461, %v460
    %v579 = vpack.c.b16 %v463, %v462
    %v580 = vpack.c.b16 %v465, %v464
    %v581 = vpack.c.b16 %v467, %v466
    %v582 = vpack.c.b16 %v469, %v468
    %v583 = vpack.c.b16 %v471, %v470
    %v584 = vpack.c.b16 %v473, %v472
    %v585 = vpack.c.b16 %v475, %v474
    %v586 = vpack.c.b16 %v477, %v476
    %v587 = vpack.c.b16 %v479, %v478
    %v588 = vpack.c.b16 %v481, %v480
    %v589 = vpack.c.b16 %v483, %v482
    %v590 = vpack.c.b16 %v485, %v484
    %v591 = vpack.c.b16 %v487, %v486
    %v592 = vpack.c.b16 %v489, %v488
    %v593 = vpack.c.b16 %v491, %v490
    %v594 = vpack.c.b16 %v493, %v492
    %v595 = vpack.c.b16 %v495, %v494
    %v596 = vpack.c.b16 %v497, %v496
    %v597 = vpack.c.b16 %v499, %v498
    %v598 = vpack.c.b16 %v501, %v500
    %v599 = vpack.c.b16 %v503, %v502
    %v600 = vpack.c.b16 %v505, %v504
    %v601 = vpack.c.b16 %v507, %v506
    %v602 = vpack.c.b16 %v509, %v508
    %v603 = vpack.c.b16 %v511, %v510
    %v604 = vpack.c.b16 %v513, %v512
    %v605 = vpack.c.b16 %v515, %v514
    %v606 = vpack.c.b16 %v517, %v516
    %v607 = vpack.c.b16 %v519, %v518
    %v608 = vpack.c.b16 %v521, %v520
    %v609 = vpack.c.b16 %v523, %v522
    %v610 = vpack.c.b16 %v525, %v524
    %v611 = vpack.c.b16 %v527, %v526
    %v612 = vpack.c.b16 %v529, %v528
    %v613 = vpack.c.b16 %v531, %v530
    %v614 = vpack.c.b16 %v533, %v532
    %v615 = vpack.c.b16 %v535, %v534
    %v616 = vpack.c.b16 %v537, %v536
    %v617 = vpack.c.b16 %v539, %v538
    %v618 = vpack.c.b16 %v541, %v540
    %v619 = vpack.c.b16 %v543, %v542
    %v620 = vpack.c.b16 %v544, %v544
    %vm696 = vcmask 441344
    %v698 = vsel %vm696, %v91, 0
    %vm700 = vcmask 1042432
    %v702 = vsel %vm700, %v620, 0
    %704 = vmatprep.subr.bf16.mxu0 0
    %705 = vmatpush1.bf16.msra.mxu0 %v545
    %706 = vmatprep.subr.bf16.mxu0 0
    %707 = vmatpush1.bf16.msra.mxu0 %v546
    %708 = vmatprep.subr.bf16.mxu0 0
    %709 = vmatpush1.bf16.msra.mxu0 %v547
    %710 = vmatprep.subr.bf16.mxu0 0
    %711 = vmatpush1.bf16.msra.mxu0 %v548
    %712 = vmatprep.subr.bf16.mxu0 0
    %713 = vmatpush1.bf16.msra.mxu0 %v549
    %714 = vmatprep.subr.bf16.mxu0 0
    %715 = vmatpush1.bf16.msra.mxu0 %v550
    %716 = vmatprep.subr.bf16.mxu0 0
    %717 = vmatpush1.bf16.msra.mxu0 %v551
    %718 = vmatprep.subr.bf16.mxu0 0
    %719 = vmatpush1.bf16.msra.mxu0 %v552
    %720 = vmatprep.subr.bf16.mxu0 0
    %721 = vmatpush1.bf16.msra.mxu0 %v553
    %722 = vmatprep.subr.bf16.mxu0 0
    %723 = vmatpush1.bf16.msra.mxu0 %v554
    %724 = vmatprep.subr.bf16.mxu0 0
    %725 = vmatpush1.bf16.msra.mxu0 %v555
    %726 = vmatprep.subr.bf16.mxu0 0
    %727 = vmatpush1.bf16.msra.mxu0 %v556
    %728 = vmatprep.subr.bf16.mxu0 0
    %729 = vmatpush1.bf16.msra.mxu0 %v557
    %730 = vmatprep.subr.bf16.mxu0 0
    %731 = vmatpush1.bf16.msra.mxu0 %v558
    %732 = vmatprep.subr.bf16.mxu0 0
    %733 = vmatpush1.bf16.msra.mxu0 %v559
    %734 = vmatprep.subr.bf16.mxu0 0
    %735 = vmatpush1.bf16.msra.mxu0 %v560
    %736 = vmatprep.mubr.bf16.mxu0 %v83
    %737 = vmatmul.mubr.bf16.gmra.mrb[0].mxu0 %v82
    %v738 = vpop.f32.mrb[0].mxu0
    %v739 = vadd.f32 0.0, %v738
    %v740 = vpop.f32.mrb[0].mxu0
    %v741 = vpop.f32.mrb[0].mxu0
    %v742 = vpop.f32.mrb[0].mxu0
    %743 = vdwg.mxu0
    %744 = vmatprep.subr.bf16.mxu0 0
    %745 = vmatpush1.bf16.msra.mxu0 %v561
    %746 = vmatprep.subr.bf16.mxu0 0
    %747 = vmatpush1.bf16.msra.mxu0 %v562
    %748 = vmatprep.subr.bf16.mxu0 0
    %749 = vmatpush1.bf16.msra.mxu0 %v563
    %750 = vmatprep.subr.bf16.mxu0 0
    %751 = vmatpush1.bf16.msra.mxu0 %v564
    %752 = vmatprep.subr.bf16.mxu0 0
    %753 = vmatpush1.bf16.msra.mxu0 %v565
    %754 = vmatprep.subr.bf16.mxu0 0
    %755 = vmatpush1.bf16.msra.mxu0 %v566
    %756 = vmatprep.subr.bf16.mxu0 0
    %757 = vmatpush1.bf16.msra.mxu0 %v567
    %758 = vmatprep.subr.bf16.mxu0 0
    %759 = vmatpush1.bf16.msra.mxu0 %v568
    %760 = vmatprep.subr.bf16.mxu0 0
    %761 = vmatpush1.bf16.msra.mxu0 %v569
    %762 = vmatprep.subr.bf16.mxu0 0
    %763 = vmatpush1.bf16.msra.mxu0 %v570
    %764 = vmatprep.subr.bf16.mxu0 0
    %765 = vmatpush1.bf16.msra.mxu0 %v571
    %766 = vmatprep.subr.bf16.mxu0 0
    %767 = vmatpush1.bf16.msra.mxu0 %v572
    %768 = vmatprep.subr.bf16.mxu0 0
    %769 = vmatpush1.bf16.msra.mxu0 %v573
    %770 = vmatprep.subr.bf16.mxu0 0
    %771 = vmatpush1.bf16.msra.mxu0 %v574
    %772 = vmatprep.subr.bf16.mxu0 0
    %773 = vmatpush1.bf16.msra.mxu0 %v575
    %774 = vmatprep.subr.bf16.mxu0 0
    %775 = vmatpush1.bf16.msra.mxu0 %v576
    %776 = vmatprep.mubr.bf16.mxu0 %v85
    %777 = vmatmul.mubr.bf16.gmra.mrb[0].mxu0 %v84
    %v778 = vpop.f32.mrb[0].mxu0
    %v779 = vadd.f32 %v739, %v778
    %v780 = vpop.f32.mrb[0].mxu0
    %v781 = vpop.f32.mrb[0].mxu0
    %v782 = vpop.f32.mrb[0].mxu0
    %783 = vdwg.mxu0
    %784 = vmatprep.subr.bf16.mxu0 0
    %785 = vmatpush1.bf16.msra.mxu0 %v577
    %786 = vmatprep.subr.bf16.mxu0 0
    %787 = vmatpush1.bf16.msra.mxu0 %v578
    %788 = vmatprep.subr.bf16.mxu0 0
    %789 = vmatpush1.bf16.msra.mxu0 %v579
    %790 = vmatprep.subr.bf16.mxu0 0
    %791 = vmatpush1.bf16.msra.mxu0 %v580
    %792 = vmatprep.subr.bf16.mxu0 0
    %793 = vmatpush1.bf16.msra.mxu0 %v581
    %794 = vmatprep.subr.bf16.mxu0 0
    %795 = vmatpush1.bf16.msra.mxu0 %v582
    %796 = vmatprep.subr.bf16.mxu0 0
    %797 = vmatpush1.bf16.msra.mxu0 %v583
    %798 = vmatprep.subr.bf16.mxu0 0
    %799 = vmatpush1.bf16.msra.mxu0 %v584
    %800 = vmatprep.subr.bf16.mxu0 0
    %801 = vmatpush1.bf16.msra.mxu0 %v585
    %802 = vmatprep.subr.bf16.mxu0 0
    %803 = vmatpush1.bf16.msra.mxu0 %v586
    %804 = vmatprep.subr.bf16.mxu0 0
    %805 = vmatpush1.bf16.msra.mxu0 %v587
    %806 = vmatprep.subr.bf16.mxu0 0
    %807 = vmatpush1.bf16.msra.mxu0 %v588
    %808 = vmatprep.subr.bf16.mxu0 0
    %809 = vmatpush1.bf16.msra.mxu0 %v589
    %810 = vmatprep.subr.bf16.mxu0 0
    %811 = vmatpush1.bf16.msra.mxu0 %v590
    %812 = vmatprep.subr.bf16.mxu0 0
    %813 = vmatpush1.bf16.msra.mxu0 %v591
    %814 = vmatprep.subr.bf16.mxu0 0
    %815 = vmatpush1.bf16.msra.mxu0 %v592
    %816 = vmatprep.mubr.bf16.mxu0 %v87
    %817 = vmatmul.mubr.bf16.gmra.mrb[0].mxu0 %v86
    %v818 = vpop.f32.mrb[0].mxu0
    %v819 = vadd.f32 %v779, %v818
    %v820 = vpop.f32.mrb[0].mxu0
    %v821 = vpop.f32.mrb[0].mxu0
    %v822 = vpop.f32.mrb[0].mxu0
    %823 = vdwg.mxu0
    %824 = vmatprep.subr.bf16.mxu0 0
    %825 = vmatpush1.bf16.msra.mxu0 %v593
    %826 = vmatprep.subr.bf16.mxu0 0
    %827 = vmatpush1.bf16.msra.mxu0 %v594
    %828 = vmatprep.subr.bf16.mxu0 0
    %829 = vmatpush1.bf16.msra.mxu0 %v595
    %830 = vmatprep.subr.bf16.mxu0 0
    %831 = vmatpush1.bf16.msra.mxu0 %v596
    %832 = vmatprep.subr.bf16.mxu0 0
    %833 = vmatpush1.bf16.msra.mxu0 %v597
    %834 = vmatprep.subr.bf16.mxu0 0
    %835 = vmatpush1.bf16.msra.mxu0 %v598
    %836 = vmatprep.subr.bf16.mxu0 0
    %837 = vmatpush1.bf16.msra.mxu0 %v599
    %838 = vmatprep.subr.bf16.mxu0 0
    %839 = vmatpush1.bf16.msra.mxu0 %v600
    %840 = vmatprep.subr.bf16.mxu0 0
    %841 = vmatpush1.bf16.msra.mxu0 %v601
    %842 = vmatprep.subr.bf16.mxu0 0
    %843 = vmatpush1.bf16.msra.mxu0 %v602
    %844 = vmatprep.subr.bf16.mxu0 0
    %845 = vmatpush1.bf16.msra.mxu0 %v603
    %846 = vmatprep.subr.bf16.mxu0 0
    %847 = vmatpush1.bf16.msra.mxu0 %v604
    %848 = vmatprep.subr.bf16.mxu0 0
    %849 = vmatpush1.bf16.msra.mxu0 %v605
    %850 = vmatprep.subr.bf16.mxu0 0
    %851 = vmatpush1.bf16.msra.mxu0 %v606
    %852 = vmatprep.subr.bf16.mxu0 0
    %853 = vmatpush1.bf16.msra.mxu0 %v607
    %854 = vmatprep.subr.bf16.mxu0 0
    %855 = vmatpush1.bf16.msra.mxu0 %v608
    %856 = vmatprep.mubr.bf16.mxu0 %v89
    %857 = vmatmul.mubr.bf16.gmra.mrb[0].mxu0 %v88
    %v858 = vpop.f32.mrb[0].mxu0
    %v859 = vadd.f32 %v819, %v858
    %v860 = vpop.f32.mrb[0].mxu0
    %v861 = vpop.f32.mrb[0].mxu0
    %v862 = vpop.f32.mrb[0].mxu0
    %863 = vdwg.mxu0
    %864 = vmatprep.subr.bf16.mxu0 0
    %865 = vmatpush1.bf16.msra.mxu0 %v609
    %866 = vmatprep.subr.bf16.mxu0 0
    %867 = vmatpush1.bf16.msra.mxu0 %v610
    %868 = vmatprep.subr.bf16.mxu0 0
    %869 = vmatpush1.bf16.msra.mxu0 %v611
    %870 = vmatprep.subr.bf16.mxu0 0
    %871 = vmatpush1.bf16.msra.mxu0 %v612
    %872 = vmatprep.subr.bf16.mxu0 0
    %873 = vmatpush1.bf16.msra.mxu0 %v613
    %874 = vmatprep.subr.bf16.mxu0 0
    %875 = vmatpush1.bf16.msra.mxu0 %v614
    %876 = vmatprep.subr.bf16.mxu0 0
    %877 = vmatpush1.bf16.msra.mxu0 %v615
    %878 = vmatprep.subr.bf16.mxu0 0
    %879 = vmatpush1.bf16.msra.mxu0 %v616
    %880 = vmatprep.subr.bf16.mxu0 0
    %881 = vmatpush1.bf16.msra.mxu0 %v617
    %882 = vmatprep.subr.bf16.mxu0 0
    %883 = vmatpush1.bf16.msra.mxu0 %v618
    %884 = vmatprep.subr.bf16.mxu0 0
    %885 = vmatpush1.bf16.msra.mxu0 %v619
    %886 = vmatprep.subr.bf16.mxu0 0
    %887 = vmatpush1.bf16.msra.mxu0 %v702
    %888 = vmatprep.subr.bf16.mxu0 0
    %889 = vmatpush1.bf16.msra.mxu0 0
    %890 = vmatprep.subr.bf16.mxu0 0
    %891 = vmatpush1.bf16.msra.mxu0 0
    %892 = vmatprep.subr.bf16.mxu0 0
    %893 = vmatpush1.bf16.msra.mxu0 0
    %894 = vmatprep.subr.bf16.mxu0 0
    %895 = vmatpush1.bf16.msra.mxu0 0
    %896 = vmatprep.mubr.bf16.mxu0 %v698
    %897 = vmatmul.mubr.bf16.gmra.mrb[0].mxu0 %v90
    %v898 = vpop.f32.mrb[0].mxu0
    %v899 = vadd.f32 %v859, %v898
    %v900 = vpop.f32.mrb[0].mxu0
    %v901 = vpop.f32.mrb[0].mxu0
    %v902 = vpop.f32.mrb[0].mxu0
    %903 = vdwg.mxu0
    %v904 = vmax.f32 %v899, 0.0
    %v905 = vpack.c.bf16 %v904, %v904
    %v906 = vld [vmem:[%s2] sm:$0xf]
    %v907 = vld [vmem:[%s2 + $0x4] sm:$0xf]
    %v908 = vld [vmem:[%s2 + $0x8] sm:$0xf]
    %v909 = vld [vmem:[%s2 + $0xc] sm:$0xf]
    %v910 = vld [vmem:[%s2 + $0x10] sm:$0xf]
    %v911 = vld [vmem:[%s2 + $0x14] sm:$0xf]
    %v912 = vld [vmem:[%s2 + $0x18] sm:$0xf]
    %v913 = vld [vmem:[%s2 + $0x1c] sm:$0xf]
    %v914 = vld [vmem:[%s2 + $0x20] sm:$0xf]
    %v915 = vld [vmem:[%s2 + $0x24] sm:$0xf]
    %v916 = vld [vmem:[%s2 + $0x28] sm:$0xf]
    %v917 = vld [vmem:[%s2 + $0x2c] sm:$0xf]
    %v918 = vld [vmem:[%s2 + $0x30] sm:$0xf]
    %v919 = vld [vmem:[%s2 + $0x34] sm:$0xf]
    %v920 = vld [vmem:[%s2 + $0x38] sm:$0xf]
    %v921 = vld [vmem:[%s2 + $0x3c] sm:$0xf]
    %v922 = vld [vmem:[%s3] sm:$0x1]
    %v924 = vlaneseq
    %v925 = vshrl.u32 %v924, 7
    %v926 = vsub.s32 0, %v925
    %v927 = vrot.slane %v922, %v926
    %v945 = vunpack.c.l.b16 %v906
    %v946 = vunpack.c.l.b16 %v907
    %v947 = vunpack.c.l.b16 %v908
    %v948 = vunpack.c.l.b16 %v909
    %v949 = vunpack.c.l.b16 %v910
    %v950 = vunpack.c.l.b16 %v911
    %v951 = vunpack.c.l.b16 %v912
    %v952 = vunpack.c.l.b16 %v913
    %v953 = vunpack.c.l.b16 %v914
    %v954 = vunpack.c.l.b16 %v915
    %v955 = vunpack.c.l.b16 %v916
    %v956 = vunpack.c.l.b16 %v917
    %v957 = vunpack.c.l.b16 %v918
    %v958 = vunpack.c.l.b16 %v919
    %v959 = vunpack.c.l.b16 %v920
    %v960 = vunpack.c.l.b16 %v921
    %v961 = vpack.c.b16 %v946, %v945
    %v962 = vpack.c.b16 %v948, %v947
    %v963 = vpack.c.b16 %v950, %v949
    %v964 = vpack.c.b16 %v952, %v951
    %v965 = vpack.c.b16 %v954, %v953
    %v966 = vpack.c.b16 %v956, %v955
    %v967 = vpack.c.b16 %v958, %v957
    %v968 = vpack.c.b16 %v960, %v959
    %977 = vmatprep.subr.bf16.mxu0 0
    %978 = vmatpush1.bf16.msra.mxu0 %v961
    %979 = vmatprep.subr.bf16.mxu0 0
    %980 = vmatpush1.bf16.msra.mxu0 %v962
    %981 = vmatprep.subr.bf16.mxu0 0
    %982 = vmatpush1.bf16.msra.mxu0 %v963
    %983 = vmatprep.subr.bf16.mxu0 0
    %984 = vmatpush1.bf16.msra.mxu0 %v964
    %985 = vmatprep.subr.bf16.mxu0 0
    %986 = vmatpush1.bf16.msra.mxu0 %v965
    %987 = vmatprep.subr.bf16.mxu0 0
    %988 = vmatpush1.bf16.msra.mxu0 %v966
    %989 = vmatprep.subr.bf16.mxu0 0
    %990 = vmatpush1.bf16.msra.mxu0 %v967
    %991 = vmatprep.subr.bf16.mxu0 0
    %992 = vmatpush1.bf16.msra.mxu0 %v968
    %993 = vmatprep.subr.bf16.mxu0 0
    %994 = vmatpush1.bf16.msra.mxu0 0
    %995 = vmatprep.subr.bf16.mxu0 0
    %996 = vmatpush1.bf16.msra.mxu0 0
    %997 = vmatprep.subr.bf16.mxu0 0
    %998 = vmatpush1.bf16.msra.mxu0 0
    %999 = vmatprep.subr.bf16.mxu0 0
    %1000 = vmatpush1.bf16.msra.mxu0 0
    %1001 = vmatprep.subr.bf16.mxu0 0
    %1002 = vmatpush1.bf16.msra.mxu0 0
    %1003 = vmatprep.subr.bf16.mxu0 0
    %1004 = vmatpush1.bf16.msra.mxu0 0
    %1005 = vmatprep.subr.bf16.mxu0 0
    %1006 = vmatpush1.bf16.msra.mxu0 0
    %1007 = vmatprep.subr.bf16.mxu0 0
    %1008 = vmatpush1.bf16.msra.mxu0 0
    %1009 = vmatprep.mubr.bf16.mxu0 0
    %1010 = vmatmul.mubr.bf16.gmra.mrb[0].mxu0 %v905
    %v1011 = vpop.f32.mrb[0].mxu0
    %v1012 = vadd.f32 %v927, %v1011
    %v1013 = vpop.f32.mrb[0].mxu0
    %v1014 = vpop.f32.mrb[0].mxu0
    %v1015 = vpop.f32.mrb[0].mxu0
    %1016 = vdwg.mxu0
    %v1017 = vmax.f32 %v1012, 0.0
    %v1018 = vpack.c.bf16 %v1017, %v1017
    %v1019 = vld [vmem:[#allocation5] sm:$0xf]
    %v1020 = vld [vmem:[#allocation5 + $0x4] sm:$0xf]
    %v1021 = vld [vmem:[#allocation5 + $0x8] sm:$0xf]
    %v1022 = vld [vmem:[#allocation5 + $0xc] sm:$0xf]
    %v1023 = vld [vmem:[%s5] sm:$0x1]
    %v1025 = vlaneseq
    %v1026 = vshrl.u32 %v1025, 7
    %v1027 = vsub.s32 0, %v1026
    %v1028 = vrot.slane %v1023, %v1027
    %v1034 = vunpack.c.l.b16 %v1019
    %v1035 = vunpack.c.l.b16 %v1020
    %v1036 = vunpack.c.l.b16 %v1021
    %v1037 = vunpack.c.l.b16 %v1022
    %v1038 = vpack.c.b16 %v1035, %v1034
    %v1039 = vpack.c.b16 %v1037, %v1036
    %vm1042 = vcmask 261120
    %v1044 = vsel %vm1042, %v1018, 0
    %1046 = vmatprep.subr.bf16.mxu0 0
    %1047 = vmatpush1.bf16.msra.mxu0 %v1038
    %1048 = vmatprep.subr.bf16.mxu0 0
    %1049 = vmatpush1.bf16.msra.mxu0 %v1039
    %1050 = vmatprep.subr.bf16.mxu0 0
    %1051 = vmatpush1.bf16.msra.mxu0 0
    %1052 = vmatprep.subr.bf16.mxu0 0
    %1053 = vmatpush1.bf16.msra.mxu0 0
    %1054 = vmatprep.subr.bf16.mxu0 0
    %1055 = vmatpush1.bf16.msra.mxu0 0
    %1056 = vmatprep.subr.bf16.mxu0 0
    %1057 = vmatpush1.bf16.msra.mxu0 0
    %1058 = vmatprep.subr.bf16.mxu0 0
    %1059 = vmatpush1.bf16.msra.mxu0 0
    %1060 = vmatprep.subr.bf16.mxu0 0
    %1061 = vmatpush1.bf16.msra.mxu0 0
    %1062 = vmatprep.subr.bf16.mxu0 0
    %1063 = vmatpush1.bf16.msra.mxu0 0
    %1064 = vmatprep.subr.bf16.mxu0 0
    %1065 = vmatpush1.bf16.msra.mxu0 0
    %1066 = vmatprep.subr.bf16.mxu0 0
    %1067 = vmatpush1.bf16.msra.mxu0 0
    %1068 = vmatprep.subr.bf16.mxu0 0
    %1069 = vmatpush1.bf16.msra.mxu0 0
    %1070 = vmatprep.subr.bf16.mxu0 0
    %1071 = vmatpush1.bf16.msra.mxu0 0
    %1072 = vmatprep.subr.bf16.mxu0 0
    %1073 = vmatpush1.bf16.msra.mxu0 0
    %1074 = vmatprep.subr.bf16.mxu0 0
    %1075 = vmatpush1.bf16.msra.mxu0 0
    %1076 = vmatprep.subr.bf16.mxu0 0
    %1077 = vmatpush1.bf16.msra.mxu0 0
    %1078 = vmatprep.mubr.bf16.mxu0 0
    %1079 = vmatmul.mubr.bf16.gmra.mrb[0].mxu0 %v1044
    %v1080 = vpop.f32.mrb[0].mxu0
    %v1081 = vadd.f32 %v1028, %v1080
    %v1082 = vpop.f32.mrb[0].mxu0
    %v1083 = vpop.f32.mrb[0].mxu0
    %v1084 = vpop.f32.mrb[0].mxu0
    %1085 = vdwg.mxu0
    %v1086 = vmax.f32 %v1081, 0.0
    %v1087 = vpack.c.bf16 %v1086, %v1086
    %v1088 = vld [vmem:[#allocation7] sm:$0xf]
    %v1089 = vld [vmem:[#allocation7 + $0x4] sm:$0xf]
    %v1090 = vld [vmem:[#allocation7 + $0x8] sm:$0xf]
    %v1091 = vld [vmem:[#allocation7 + $0xc] sm:$0xf]
    %v1092 = vld [vmem:[#allocation7 + $0x10] sm:$0xf]
    %v1093 = vld [vmem:[#allocation7 + $0x14] sm:$0xf]
    %v1094 = vld [vmem:[#allocation7 + $0x18] sm:$0xf]
    %v1095 = vld [vmem:[#allocation7 + $0x1c] sm:$0xf]
    %v1096 = vld [vmem:[%s7] sm:$0x1]
    %v1098 = vlaneseq
    %v1099 = vshrl.u32 %v1098, 7
    %v1100 = vsub.s32 0, %v1099
    %v1101 = vrot.slane %v1096, %v1100
    %v1111 = vunpack.c.l.b16 %v1088
    %v1112 = vunpack.c.l.b16 %v1089
    %v1113 = vunpack.c.l.b16 %v1090
    %v1114 = vunpack.c.l.b16 %v1091
    %v1115 = vunpack.c.l.b16 %v1092
    %v1116 = vunpack.c.l.b16 %v1093
    %v1117 = vunpack.c.l.b16 %v1094
    %v1118 = vunpack.c.l.b16 %v1095
    %v1119 = vpack.c.b16 %v1112, %v1111
    %v1120 = vpack.c.b16 %v1114, %v1113
    %v1121 = vpack.c.b16 %v1116, %v1115
    %v1122 = vpack.c.b16 %v1118, %v1117
    %vm1127 = vcmask 523264
    %v1129 = vsel %vm1127, %v1087, 0
    %1131 = vmatprep.subr.bf16.mxu0 0
    %1132 = vmatpush1.bf16.msra.mxu0 %v1119
    %1133 = vmatprep.subr.bf16.mxu0 0
    %1134 = vmatpush1.bf16.msra.mxu0 %v1120
    %1135 = vmatprep.subr.bf16.mxu0 0
    %1136 = vmatpush1.bf16.msra.mxu0 %v1121
    %1137 = vmatprep.subr.bf16.mxu0 0
    %1138 = vmatpush1.bf16.msra.mxu0 %v1122
    %1139 = vmatprep.subr.bf16.mxu0 0
    %1140 = vmatpush1.bf16.msra.mxu0 0
    %1141 = vmatprep.subr.bf16.mxu0 0
    %1142 = vmatpush1.bf16.msra.mxu0 0
    %1143 = vmatprep.subr.bf16.mxu0 0
    %1144 = vmatpush1.bf16.msra.mxu0 0
    %1145 = vmatprep.subr.bf16.mxu0 0
    %1146 = vmatpush1.bf16.msra.mxu0 0
    %1147 = vmatprep.subr.bf16.mxu0 0
    %1148 = vmatpush1.bf16.msra.mxu0 0
    %1149 = vmatprep.subr.bf16.mxu0 0
    %1150 = vmatpush1.bf16.msra.mxu0 0
    %1151 = vmatprep.subr.bf16.mxu0 0
    %1152 = vmatpush1.bf16.msra.mxu0 0
    %1153 = vmatprep.subr.bf16.mxu0 0
    %1154 = vmatpush1.bf16.msra.mxu0 0
    %1155 = vmatprep.subr.bf16.mxu0 0
    %1156 = vmatpush1.bf16.msra.mxu0 0
    %1157 = vmatprep.subr.bf16.mxu0 0
    %1158 = vmatpush1.bf16.msra.mxu0 0
    %1159 = vmatprep.subr.bf16.mxu0 0
    %1160 = vmatpush1.bf16.msra.mxu0 0
    %1161 = vmatprep.subr.bf16.mxu0 0
    %1162 = vmatpush1.bf16.msra.mxu0 0
    %1163 = vmatprep.mubr.bf16.mxu0 0
    %1164 = vmatmul.mubr.bf16.gmra.mrb[0].mxu0 %v1129
    %v1165 = vpop.f32.mrb[0].mxu0
    %v1166 = vadd.f32 %v1101, %v1165
    %v1167 = vpop.f32.mrb[0].mxu0
    %v1168 = vpop.f32.mrb[0].mxu0
    %v1169 = vpop.f32.mrb[0].mxu0
    %1170 = vdwg.mxu0
    %v1171 = vmul.f32 %v1166, %v1166
    %v1172 = vsel %vm1127, %v1171, 0.0
    %1173 = vadd.xlane.f32.xlu0 %v1172
    %v1174 = vpop.xlane.xlu0 %1173
    %v1175 = vmax.f32 %v1174, 1e-24
    %v1176 = vrsqrt.pop %v1175
    %v1177 = vmul.f32 %v1166, %v1176
    %1178 = vst.msk [vmem:[#allocation8] sm:$0xff] %vm1127, %v1177
    // Predicated region
    $region46: #{tpu_custom_call.1} parent=1 // pred_check
      _
    $region47: #{tpu_custom_call.1} parent=1 // pred_check_branch
      %1180 = sbr.rel (0) target = $region49
    $region48: #{tpu_custom_call.1} parent=1 // pred_region
      %s1182 = ssub.s32 128, 128
      %1183 = vsyncadd [#allocation4], %s1182
      %s1185 = sshll.u32 [#allocation8], 4
      %s1186 = int_to_ptr.vmem [resolvable:$true] %s1185
      %1188 = dma.vmem_to_hbm [thread:$0]  %s1186, 128, %s8, [#allocation4]
    $region49: #{tpu_custom_call.1} parent=1 // pred_fallthru
      _
    // Predicated region
    $region50: #{tpu_custom_call.1} parent=1 // pred_check
      _
    $region51: #{tpu_custom_call.1} parent=1 // pred_check_branch
      %1190 = sbr.rel (0) target = $region53
    $region52: #{tpu_custom_call.1} parent=1 // pred_region
      %1191 = dma.done [#allocation4], 128
    $region53: #{tpu_custom_call.1} parent=1 // pred_fallthru
      _
    %1192 = vsyncpa [#allocation3], 1
    %1193 = vsyncpa [#allocation6], 1
    %1194 = vsyncpa [#allocation4], 1

</llo_original>
